<compile_context>
chip_gen: v7x
topology: tpu7x:2x2x1
jax: 0.10.0
libtpu: 0.0.40
codegen_flags: <defaults>
</compile_context>

<pallas_src>
import functools

import jax
import jax.numpy as jnp
from jax.experimental import pallas as pl
from jax.experimental.pallas import tpu as pltpu

LANE = 128  # TPU lane width


def _mlp_kernel(x_ref, w1_ref, b1_ref, w2_ref, b2_ref, o_ref):
    # fc1: [TB, F] @ [F, H_pad] + [1, H_pad]   (MXU, f32 accumulation)
    h = jnp.dot(x_ref[...], w1_ref[...], preferred_element_type=jnp.float32)
    h = h + b1_ref[...]
    # sigmoid: exp lands on the EUP slot; exact reciprocal keeps numerics tight.
    h = 1.0 / (1.0 + jnp.exp(-h))
    # fc2: [TB, H_pad] @ [H_pad, O_pad] + [1, O_pad] -> lane-dense 128-wide out
    out = jnp.dot(h, w2_ref[...], preferred_element_type=jnp.float32)
    out = out + b2_ref[...]
    o_ref[...] = out.astype(o_ref.dtype)


def _pad_to_lane(n):
    return max(LANE, pl.cdiv(n, LANE) * LANE)


@functools.partial(jax.jit, static_argnames=("tile_b",))
def simple_nn_forward(x, w1, b1, w2, b2, *, tile_b=512):
    """x: [B, F] f32; w1: [F, H]; b1: [H]; w2: [H, O]; b2: [O] -> [B, O] f32."""
    B, F = x.shape
    H = w1.shape[1]
    O = w2.shape[1]

    # Lane-dense padding: hidden dim H -> H_pad and output dim O -> O_pad.
    # Padded w1 columns / b1 entries are zero -> sigmoid gives 0.5 there, but
    # the matching padded w2 rows are zero, so the padding contributes 0.
    H_pad = _pad_to_lane(H)
    O_pad = _pad_to_lane(O)
    w1_p = jnp.zeros((F, H_pad), w1.dtype).at[:, :H].set(w1)
    b1_p = jnp.zeros((1, H_pad), b1.dtype).at[0, :H].set(b1)
    w2_p = jnp.zeros((H_pad, O_pad), w2.dtype).at[:H, :O].set(w2)
    b2_p = jnp.zeros((1, O_pad), b2.dtype).at[0, :O].set(b2)

    if B <= tile_b:
        # Single-tile problem: no grid at all. Full-array blocks resident in
        # VMEM, no pipeline prologue/epilogue, no double-buffering of weights.
        out = pl.pallas_call(
            _mlp_kernel,
            out_shape=jax.ShapeDtypeStruct((B, O_pad), jnp.float32),
            in_specs=[pl.BlockSpec(memory_space=pltpu.MemorySpace.VMEM)] * 5,
            out_specs=pl.BlockSpec(memory_space=pltpu.MemorySpace.VMEM),
        )(x, w1_p, b1_p, w2_p, b2_p)
    else:
        # Larger batches: tile only the batch dim; weights/biases stay
        # resident across grid steps (index_map -> (0, 0)). "parallel" lets
        # v7x shard the batch axis across its two TensorCores.
        out = pl.pallas_call(
            _mlp_kernel,
            out_shape=jax.ShapeDtypeStruct((B, O_pad), jnp.float32),
            grid_spec=pltpu.PrefetchScalarGridSpec(
                num_scalar_prefetch=0,
                grid=(pl.cdiv(B, tile_b),),
                in_specs=[
                    pl.BlockSpec((tile_b, F), lambda i: (i, 0)),
                    pl.BlockSpec((F, H_pad), lambda i: (0, 0)),
                    pl.BlockSpec((1, H_pad), lambda i: (0, 0)),
                    pl.BlockSpec((H_pad, O_pad), lambda i: (0, 0)),
                    pl.BlockSpec((1, O_pad), lambda i: (0, 0)),
                ],
                out_specs=pl.BlockSpec((tile_b, O_pad), lambda i: (i, 0)),
            ),
            compiler_params=pltpu.CompilerParams(
                dimension_semantics=("parallel",)
            ),
        )(x, w1_p, b1_p, w2_p, b2_p)

    return out[:, :O]


if __name__ == "__main__":
    # Shapes consistent with the module: flattened 8x8 digit images.
    input_size = 64      # X.reshape(X.shape[0], -1) on 8x8 digits
    hidden_size = 64
    output_size = 10

    key = jax.random.PRNGKey(0)
    kx, kw1, kb1, kw2, kb2, kx2 = jax.random.split(key, 6)

    # Deterministic synthetic parameters (uniform, torch-Linear-like scale).
    lim1 = 1.0 / (input_size ** 0.5)
    lim2 = 1.0 / (hidden_size ** 0.5)
    w1 = jax.random.uniform(kw1, (input_size, hidden_size),
                            minval=-lim1, maxval=lim1, dtype=jnp.float32)
    b1 = jax.random.uniform(kb1, (hidden_size,),
                            minval=-lim1, maxval=lim1, dtype=jnp.float32)
    w2 = jax.random.uniform(kw2, (hidden_size, output_size),
                            minval=-lim2, maxval=lim2, dtype=jnp.float32)
    b2 = jax.random.uniform(kb2, (output_size,),
                            minval=-lim2, maxval=lim2, dtype=jnp.float32)

    def ref_fn(xx):
        return (1.0 / (1.0 + jnp.exp(-(xx @ w1 + b1)))) @ w2 + b2

    # --- Small batch: gridless single-tile path ---
    batch = 8
    x = jax.random.normal(kx, (batch, input_size), dtype=jnp.float32)
    out = jax.block_until_ready(simple_nn_forward(x, w1, b1, w2, b2))
    assert out.shape == (batch, output_size)
    assert jnp.allclose(out, ref_fn(x), atol=1e-5, rtol=1e-5)

    # --- Larger batch: batch-tiled path with resident weights ---
    big_batch, tile_b = 512, 128
    x_big = jax.random.normal(kx2, (big_batch, input_size), dtype=jnp.float32)
    out_big = jax.block_until_ready(
        simple_nn_forward(x_big, w1, b1, w2, b2, tile_b=tile_b))
    assert out_big.shape == (big_batch, output_size)
    assert jnp.allclose(out_big, ref_fn(x_big), atol=1e-5, rtol=1e-5)

    print("KERNEL_OK")
</pallas_src>

<mosaic_0001>
module attributes {stable_mosaic.version = 11 : i64} {
  func.func @_mlp_kernel(%arg0: memref<8x64xf32, #tpu.memory_space<vmem>>, %arg1: memref<64x128xf32, #tpu.memory_space<vmem>>, %arg2: memref<1x128xf32, #tpu.memory_space<vmem>>, %arg3: memref<128x128xf32, #tpu.memory_space<vmem>>, %arg4: memref<1x128xf32, #tpu.memory_space<vmem>>, %arg5: memref<8x128xf32, #tpu.memory_space<vmem>>) attributes {dimension_semantics = [], scalar_prefetch = 0 : i64, scratch_operands = 0 : i64, tpu.core_type = #tpu.core_type<tc>} {
    %c0 = arith.constant 0 : index
    %c0_0 = arith.constant 0 : index
    %0 = vector.load %arg0[%c0, %c0_0] : memref<8x64xf32, #tpu.memory_space<vmem>>, vector<8x64xf32>
    %c0_1 = arith.constant 0 : index
    %c0_2 = arith.constant 0 : index
    %1 = vector.load %arg1[%c0_1, %c0_2] : memref<64x128xf32, #tpu.memory_space<vmem>>, vector<64x128xf32>
    %cst = arith.constant dense<0.000000e+00> : vector<8x128xf32>
    %2 = tpu.matmul %0, %1, %cst {dimension_numbers = #tpu.dot_dimension_numbers<[1], [0], [0], [1], [0, 0, 1, 1], [], []>} : vector<8x64xf32>, vector<64x128xf32>, vector<8x128xf32> -> vector<8x128xf32>
    %c0_3 = arith.constant 0 : index
    %c0_4 = arith.constant 0 : index
    %3 = vector.load %arg2[%c0_3, %c0_4] : memref<1x128xf32, #tpu.memory_space<vmem>>, vector<1x128xf32>
    %4 = vector.broadcast %3 : vector<1x128xf32> to vector<8x128xf32>
    %5 = arith.addf %2, %4 : vector<8x128xf32>
    %cst_5 = arith.constant 0.000000e+00 : f32
    %6 = vector.broadcast %cst_5 : f32 to vector<8x128xf32>
    %7 = arith.subf %6, %5 : vector<8x128xf32>
    %8 = math.exp %7 : vector<8x128xf32>
    %cst_6 = arith.constant 1.000000e+00 : f32
    %9 = vector.broadcast %cst_6 : f32 to vector<8x128xf32>
    %10 = arith.addf %9, %8 : vector<8x128xf32>
    %cst_7 = arith.constant 1.000000e+00 : f32
    %11 = vector.broadcast %cst_7 : f32 to vector<8x128xf32>
    %12 = arith.divf %11, %10 : vector<8x128xf32>
    %c0_8 = arith.constant 0 : index
    %c0_9 = arith.constant 0 : index
    %13 = vector.load %arg3[%c0_8, %c0_9] : memref<128x128xf32, #tpu.memory_space<vmem>>, vector<128x128xf32>
    %cst_10 = arith.constant dense<0.000000e+00> : vector<8x128xf32>
    %14 = tpu.matmul %12, %13, %cst_10 {dimension_numbers = #tpu.dot_dimension_numbers<[1], [0], [0], [1], [0, 0, 1, 1], [], []>} : vector<8x128xf32>, vector<128x128xf32>, vector<8x128xf32> -> vector<8x128xf32>
    %c0_11 = arith.constant 0 : index
    %c0_12 = arith.constant 0 : index
    %15 = vector.load %arg4[%c0_11, %c0_12] : memref<1x128xf32, #tpu.memory_space<vmem>>, vector<1x128xf32>
    %16 = vector.broadcast %15 : vector<1x128xf32> to vector<8x128xf32>
    %17 = arith.addf %14, %16 : vector<8x128xf32>
    %c0_13 = arith.constant 0 : index
    %c0_14 = arith.constant 0 : index
    %18 = vector.load %arg5[%c0_13, %c0_14] : memref<8x128xf32, #tpu.memory_space<vmem>>, vector<8x128xf32>
    tpu.vector_store %arg5[%c0_13, %c0_14], %17 {strides = array<i32>} : memref<8x128xf32, #tpu.memory_space<vmem>>, vector<8x128xf32>,
    return
  }
}

</mosaic_0001>

<llo_original>
// kernel: simple_nn_forward.1
$region0: #{simple_nn_forward.1}
  #allocation0 [shape = 'u32[]', space=smem, size = 0x4, offset = 0x4, fixed_abs, tag = 'smem constant byte address 0x4 - core index']
  #allocation1 [shape = 'u32[144,128]{1,0:T(1,128)}', space=vmem, size = 0x12000, scoped, tag = 'internal scratch']
  %s0 = inlined_call_operand.vmem [shape: f32[8,64], index: 0, kind: input, shape index: {}]
  %s1 = inlined_call_operand.vmem [shape: f32[64,128], index: 1, kind: input, shape index: {}]
  %s2 = inlined_call_operand.vmem [shape: f32[1,128], index: 2, kind: input, shape index: {}]
  %s3 = inlined_call_operand.vmem [shape: f32[128,128], index: 3, kind: input, shape index: {}]
  %s4 = inlined_call_operand.vmem [shape: f32[1,128], index: 4, kind: input, shape index: {}]
  %s5 = inlined_call_operand.hbm [shape: f32[8,128], index: 5, kind: output, shape index: {}]
  %s6 = sld [smem:[#allocation0]]
  $region30: #{simple_nn_forward.1} parent=0
    _
  %s8 = ssub.s32 1, %s6
  %s9 = scalar_select 0, %s8, %s6
  $region1: #{simple_nn_forward.1} parent=0
    #allocation2 [shape = 'u8[4096]{0}', space=vmem, size = 0x1000, scoped, tag = 'output window, operand 0, single buffered']
    #allocation3 [shape = 's32[1]{0}', space=sflag, size = 0x4, scoped, tag = 'scoped memory for simple_nn_forward.1']
    %10 = vsyncpa [#allocation3], 0
    // Predicated region
    $region2: #{simple_nn_forward.1} parent=1 // pred_check
      _
    $region3: #{simple_nn_forward.1} parent=1 // pred_check_branch
      %12 = sbr.rel (0) target = $region5
    $region4: #{simple_nn_forward.1} parent=1 // pred_region
      _
    $region5: #{simple_nn_forward.1} parent=1 // pred_fallthru
      _
    // Predicated region
    $region6: #{simple_nn_forward.1} parent=1 // pred_check
      _
    $region7: #{simple_nn_forward.1} parent=1 // pred_check_branch
      %14 = sbr.rel (0) target = $region9
    $region8: #{simple_nn_forward.1} parent=1 // pred_region
      _
    $region9: #{simple_nn_forward.1} parent=1 // pred_fallthru
      _
    // Predicated region
    $region10: #{simple_nn_forward.1} parent=1 // pred_check
      _
    $region11: #{simple_nn_forward.1} parent=1 // pred_check_branch
      %16 = sbr.rel (0) target = $region13
    $region12: #{simple_nn_forward.1} parent=1 // pred_region
      _
    $region13: #{simple_nn_forward.1} parent=1 // pred_fallthru
      _
    // Predicated region
    $region14: #{simple_nn_forward.1} parent=1 // pred_check
      _
    $region15: #{simple_nn_forward.1} parent=1 // pred_check_branch
      %18 = sbr.rel (0) target = $region17
    $region16: #{simple_nn_forward.1} parent=1 // pred_region
      _
    $region17: #{simple_nn_forward.1} parent=1 // pred_fallthru
      _
    // Predicated region
    $region18: #{simple_nn_forward.1} parent=1 // pred_check
      _
    $region19: #{simple_nn_forward.1} parent=1 // pred_check_branch
      %20 = sbr.rel (0) target = $region21
    $region20: #{simple_nn_forward.1} parent=1 // pred_region
      _
    $region21: #{simple_nn_forward.1} parent=1 // pred_fallthru
      _
    %v21 = vld [vmem:[%s0] sm:$0xff]
    %v22 = vld [vmem:[%s1] sm:$0xff]
    %v23 = vld [vmem:[%s1 + $0x8] sm:$0xff]
    %v24 = vld [vmem:[%s1 + $0x10] sm:$0xff]
    %v25 = vld [vmem:[%s1 + $0x18] sm:$0xff]
    %v26 = vld [vmem:[%s1 + $0x20] sm:$0xff]
    %v27 = vld [vmem:[%s1 + $0x28] sm:$0xff]
    %v28 = vld [vmem:[%s1 + $0x30] sm:$0xff]
    %v29 = vld [vmem:[%s1 + $0x38] sm:$0xff]
    %v30 = vld [vmem:[%s2] sm:$0x1]
    %v32 = vlaneseq
    %v33 = vshrl.u32 %v32, 7
    %v34 = vsub.s32 0, %v33
    %v35 = vrot.slane %v30, %v34
    %vm37 = vcmask 523264
    %v39 = vsel %vm37, %v21, 0
    %41 = vmatprep.subr.mxu0 0.0
    %42 = vmatpush1.msra.mxu0 %v22
    %43 = vmatprep.subr.mxu0 0.0
    %44 = vmatpush1.msra.mxu0 %v23
    %45 = vmatprep.subr.mxu0 0.0
    %46 = vmatpush1.msra.mxu0 %v24
    %47 = vmatprep.subr.mxu0 0.0
    %48 = vmatpush1.msra.mxu0 %v25
    %49 = vmatprep.subr.mxu0 0.0
    %50 = vmatpush1.msra.mxu0 %v26
    %51 = vmatprep.subr.mxu0 0.0
    %52 = vmatpush1.msra.mxu0 %v27
    %53 = vmatprep.subr.mxu0 0.0
    %54 = vmatpush1.msra.mxu0 %v28
    %55 = vmatprep.subr.mxu0 0.0
    %56 = vmatpush1.msra.mxu0 %v29
    %57 = vmatprep.subr.mxu0 0.0
    %58 = vmatpush1.msra.mxu0 0.0
    %59 = vmatprep.subr.mxu0 0.0
    %60 = vmatpush1.msra.mxu0 0.0
    %61 = vmatprep.subr.mxu0 0.0
    %62 = vmatpush1.msra.mxu0 0.0
    %63 = vmatprep.subr.mxu0 0.0
    %64 = vmatpush1.msra.mxu0 0.0
    %65 = vmatprep.subr.mxu0 0.0
    %66 = vmatpush1.msra.mxu0 0.0
    %67 = vmatprep.subr.mxu0 0.0
    %68 = vmatpush1.msra.mxu0 0.0
    %69 = vmatprep.subr.mxu0 0.0
    %70 = vmatpush1.msra.mxu0 0.0
    %71 = vmatprep.subr.mxu0 0.0
    %72 = vmatpush1.msra.mxu0 0.0
    %73 = vmatprep.subr.mxu0 0.0
    %74 = vmatpush1.msra.mxu0 0.0
    %75 = vmatprep.subr.mxu0 0.0
    %76 = vmatpush1.msra.mxu0 0.0
    %77 = vmatprep.subr.mxu0 0.0
    %78 = vmatpush1.msra.mxu0 0.0
    %79 = vmatprep.subr.mxu0 0.0
    %80 = vmatpush1.msra.mxu0 0.0
    %81 = vmatprep.subr.mxu0 0.0
    %82 = vmatpush1.msra.mxu0 0.0
    %83 = vmatprep.subr.mxu0 0.0
    %84 = vmatpush1.msra.mxu0 0.0
    %85 = vmatprep.subr.mxu0 0.0
    %86 = vmatpush1.msra.mxu0 0.0
    %87 = vmatprep.subr.mxu0 0.0
    %88 = vmatpush1.msra.mxu0 0.0
    %89 = vmatprep.subr.mxu0 0.0
    %90 = vmatpush1.msra.mxu0 0.0
    %91 = vmatprep.subr.mxu0 0.0
    %92 = vmatpush1.msra.mxu0 0.0
    %93 = vmatprep.subr.mxu0 0.0
    %94 = vmatpush1.msra.mxu0 0.0
    %95 = vmatprep.subr.mxu0 0.0
    %96 = vmatpush1.msra.mxu0 0.0
    %97 = vmatprep.subr.mxu0 0.0
    %98 = vmatpush1.msra.mxu0 0.0
    %99 = vmatprep.subr.mxu0 0.0
    %100 = vmatpush1.msra.mxu0 0.0
    %101 = vmatprep.subr.mxu0 0.0
    %102 = vmatpush1.msra.mxu0 0.0
    %103 = vmatprep.subr.mxu0 0.0
    %104 = vmatpush1.msra.mxu0 0.0
    %105 = vmatprep.mubr.f32.mxu0 0.0
    %106 = vmatmul.mubr.f32.gmra.mrb[0].mxu0 %v39
    %v107 = vpop.f32.mrb[0].mxu0
    %v108 = vadd.f32 %v35, %v107
    %v109 = vpop.f32.mrb[0].mxu0
    %110 = vdwg.mxu0
    %v111 = vsub.f32 0.0, %v108
    %v112 = vmul.f32 %v111, 1.442695
    %v113 = vpow.pop %v112
    %v114 = vadd.f32 %v113, 1.0
    %v115 = vrcp.pop %v114
    %v116 = vmul.f32 1.0, %v115
    %v117 = vld [vmem:[%s3] sm:$0xff]
    %v118 = vld [vmem:[%s3 + $0x8] sm:$0xff]
    %v119 = vld [vmem:[%s3 + $0x10] sm:$0xff]
    %v120 = vld [vmem:[%s3 + $0x18] sm:$0xff]
    %v121 = vld [vmem:[%s3 + $0x20] sm:$0xff]
    %v122 = vld [vmem:[%s3 + $0x28] sm:$0xff]
    %v123 = vld [vmem:[%s3 + $0x30] sm:$0xff]
    %v124 = vld [vmem:[%s3 + $0x38] sm:$0xff]
    %v125 = vld [vmem:[%s3 + $0x40] sm:$0xff]
    %v126 = vld [vmem:[%s3 + $0x48] sm:$0xff]
    %v127 = vld [vmem:[%s3 + $0x50] sm:$0xff]
    %v128 = vld [vmem:[%s3 + $0x58] sm:$0xff]
    %v129 = vld [vmem:[%s3 + $0x60] sm:$0xff]
    %v130 = vld [vmem:[%s3 + $0x68] sm:$0xff]
    %v131 = vld [vmem:[%s3 + $0x70] sm:$0xff]
    %v132 = vld [vmem:[%s3 + $0x78] sm:$0xff]
    %v133 = vld [vmem:[%s4] sm:$0x1]
    %v135 = vlaneseq
    %v136 = vshrl.u32 %v135, 7
    %v137 = vsub.s32 0, %v136
    %v138 = vrot.slane %v133, %v137
    %140 = vmatprep.subr.mxu0 0.0
    %141 = vmatpush1.msra.mxu0 %v117
    %142 = vmatprep.subr.mxu0 0.0
    %143 = vmatpush1.msra.mxu0 %v118
    %144 = vmatprep.subr.mxu0 0.0
    %145 = vmatpush1.msra.mxu0 %v119
    %146 = vmatprep.subr.mxu0 0.0
    %147 = vmatpush1.msra.mxu0 %v120
    %148 = vmatprep.subr.mxu0 0.0
    %149 = vmatpush1.msra.mxu0 %v121
    %150 = vmatprep.subr.mxu0 0.0
    %151 = vmatpush1.msra.mxu0 %v122
    %152 = vmatprep.subr.mxu0 0.0
    %153 = vmatpush1.msra.mxu0 %v123
    %154 = vmatprep.subr.mxu0 0.0
    %155 = vmatpush1.msra.mxu0 %v124
    %156 = vmatprep.subr.mxu0 0.0
    %157 = vmatpush1.msra.mxu0 %v125
    %158 = vmatprep.subr.mxu0 0.0
    %159 = vmatpush1.msra.mxu0 %v126
    %160 = vmatprep.subr.mxu0 0.0
    %161 = vmatpush1.msra.mxu0 %v127
    %162 = vmatprep.subr.mxu0 0.0
    %163 = vmatpush1.msra.mxu0 %v128
    %164 = vmatprep.subr.mxu0 0.0
    %165 = vmatpush1.msra.mxu0 %v129
    %166 = vmatprep.subr.mxu0 0.0
    %167 = vmatpush1.msra.mxu0 %v130
    %168 = vmatprep.subr.mxu0 0.0
    %169 = vmatpush1.msra.mxu0 %v131
    %170 = vmatprep.subr.mxu0 0.0
    %171 = vmatpush1.msra.mxu0 %v132
    %172 = vmatprep.subr.mxu0 0.0
    %173 = vmatpush1.msra.mxu0 0.0
    %174 = vmatprep.subr.mxu0 0.0
    %175 = vmatpush1.msra.mxu0 0.0
    %176 = vmatprep.subr.mxu0 0.0
    %177 = vmatpush1.msra.mxu0 0.0
    %178 = vmatprep.subr.mxu0 0.0
    %179 = vmatpush1.msra.mxu0 0.0
    %180 = vmatprep.subr.mxu0 0.0
    %181 = vmatpush1.msra.mxu0 0.0
    %182 = vmatprep.subr.mxu0 0.0
    %183 = vmatpush1.msra.mxu0 0.0
    %184 = vmatprep.subr.mxu0 0.0
    %185 = vmatpush1.msra.mxu0 0.0
    %186 = vmatprep.subr.mxu0 0.0
    %187 = vmatpush1.msra.mxu0 0.0
    %188 = vmatprep.subr.mxu0 0.0
    %189 = vmatpush1.msra.mxu0 0.0
    %190 = vmatprep.subr.mxu0 0.0
    %191 = vmatpush1.msra.mxu0 0.0
    %192 = vmatprep.subr.mxu0 0.0
    %193 = vmatpush1.msra.mxu0 0.0
    %194 = vmatprep.subr.mxu0 0.0
    %195 = vmatpush1.msra.mxu0 0.0
    %196 = vmatprep.subr.mxu0 0.0
    %197 = vmatpush1.msra.mxu0 0.0
    %198 = vmatprep.subr.mxu0 0.0
    %199 = vmatpush1.msra.mxu0 0.0
    %200 = vmatprep.subr.mxu0 0.0
    %201 = vmatpush1.msra.mxu0 0.0
    %202 = vmatprep.subr.mxu0 0.0
    %203 = vmatpush1.msra.mxu0 0.0
    %204 = vmatprep.mubr.f32.mxu0 0.0
    %205 = vmatmul.mubr.f32.gmra.mrb[0].mxu0 %v116
    %v206 = vpop.f32.mrb[0].mxu0
    %v207 = vadd.f32 %v138, %v206
    %v208 = vpop.f32.mrb[0].mxu0
    %209 = vdwg.mxu0
    %210 = vst [vmem:[#allocation2] sm:$0xff] %v207
    // Predicated region
    $region22: #{simple_nn_forward.1} parent=1 // pred_check
      _
    $region23: #{simple_nn_forward.1} parent=1 // pred_check_branch
      %212 = sbr.rel (0) target = $region25
    $region24: #{simple_nn_forward.1} parent=1 // pred_region
      %s214 = ssub.s32 128, 128
      %215 = vsyncadd [#allocation3], %s214
      %s217 = sshll.u32 [#allocation2], 4
      %s218 = int_to_ptr.vmem [resolvable:$true] %s217
      %220 = dma.vmem_to_hbm [thread:$0]  %s218, 128, %s5, [#allocation3]
    $region25: #{simple_nn_forward.1} parent=1 // pred_fallthru
      _
    // Predicated region
    $region26: #{simple_nn_forward.1} parent=1 // pred_check
      _
    $region27: #{simple_nn_forward.1} parent=1 // pred_check_branch
      %222 = sbr.rel (0) target = $region29
    $region28: #{simple_nn_forward.1} parent=1 // pred_region
      %223 = dma.done [#allocation3], 128
    $region29: #{simple_nn_forward.1} parent=1 // pred_fallthru
      _
    %224 = vsyncpa [#allocation3], 1

</llo_original>
